<compile_context>
chip_gen: v6e
topology: v6e:2x2x1
jax: 0.10.0
libtpu: 0.0.40
codegen_flags: <defaults>
</compile_context>

<pallas_src>
import functools

import jax
import jax.numpy as jnp
from jax import lax
from jax.experimental import pallas as pl
from jax.experimental.pallas import tpu as pltpu

BN_EPS = 1e-5        # PyTorch BatchNorm1d default eps
LANE = 128           # TPU lane width
NEG_PAD = -1e30      # bias value for padded logit lanes (exp -> 0 in softmax)


def _round_up(n, m):
    return ((n + m - 1) // m) * m


def _pick_batch_tile(batch):
    for cand in (1024, 512, 256, 128, 64, 32, 16, 8):
        if batch % cand == 0:
            return cand
    return batch


def mlp_bn_kernel(x_ref, w1_ref, gamma_ref, beta_ref, w2_ref, b2_ref,
                  o_ref, sum_ref, ssq_ref, *, batch_size):
    """Two-phase grid: phase 0 accumulates BN batch stats, phase 1 emits output."""
    phase = pl.program_id(0)
    tile = pl.program_id(1)

    # fc1 on the MXU (bf16 x bf16 -> f32 accumulate).  The fc1 bias is omitted:
    # BN subtracts the per-feature mean, which cancels it exactly.
    h = jnp.dot(x_ref[...], w1_ref[...], preferred_element_type=jnp.float32)

    @pl.when((phase == 0) & (tile == 0))
    def _init_stats():
        sum_ref[...] = jnp.zeros_like(sum_ref)
        ssq_ref[...] = jnp.zeros_like(ssq_ref)

    @pl.when(phase == 0)
    def _accumulate_stats():
        sum_ref[...] += jnp.sum(h, axis=0, keepdims=True)
        ssq_ref[...] += jnp.sum(h * h, axis=0, keepdims=True)

    @pl.when(phase == 1)
    def _normalize_and_emit():
        inv_n = 1.0 / batch_size
        mean = sum_ref[...] * inv_n
        var = jnp.maximum(ssq_ref[...] * inv_n - mean * mean, 0.0)
        # Fold BN normalization + affine into a single multiply-add.
        scale = gamma_ref[...] * lax.rsqrt(var + BN_EPS)     # EUP rsqrt
        shift = beta_ref[...] - mean * scale
        a = jnp.maximum(h * scale + shift, 0.0)              # BN affine + ReLU, f32

        # fc2 on the MXU (cast activations to the weight dtype, f32 accumulate).
        y = jnp.dot(a.astype(w2_ref.dtype), w2_ref[...],
                    preferred_element_type=jnp.float32) + b2_ref[...]

        # Numerically-stable log_softmax over the (lane-dense, padded) feature dim.
        # Padded lanes carry NEG_PAD bias -> exp underflows to 0, so they do not
        # perturb the normalizer; the wrapper slices them off.
        m = jnp.max(y, axis=1, keepdims=True)
        z = y - m
        lse = jnp.log(jnp.sum(jnp.exp(z), axis=1, keepdims=True))
        o_ref[...] = (z - lse).astype(o_ref.dtype)


def mlp_with_bn(x, w1, b1, gamma, beta, w2, b2, *, tb=None,
                mxu_dtype=jnp.bfloat16):
    """x: [B, Din]; w1: [Din, H]; w2: [H, Dout]; 1-D b1/gamma/beta/b2.

    `b1` is accepted for interface parity with nn.Linear but intentionally not
    used: BatchNorm with batch statistics cancels a per-feature bias exactly.
    """
    del b1  # mathematically redundant under BatchNorm batch statistics

    B, d_in = x.shape
    d_hidden = w1.shape[1]
    d_out = w2.shape[1]

    hp = _round_up(d_hidden, LANE)
    dp = _round_up(d_out, LANE)

    # Lane-dense padding of the hidden / output feature dims.
    w1p = jnp.pad(w1, ((0, 0), (0, hp - d_hidden))).astype(mxu_dtype)
    gammap = jnp.pad(gamma.reshape(1, -1),
                     ((0, 0), (0, hp - d_hidden))).astype(jnp.float32)
    betap = jnp.pad(beta.reshape(1, -1),
                    ((0, 0), (0, hp - d_hidden))).astype(jnp.float32)
    w2p = jnp.pad(w2, ((0, hp - d_hidden), (0, dp - d_out))).astype(mxu_dtype)
    b2p = jnp.pad(b2.reshape(1, -1), ((0, 0), (0, dp - d_out)),
                  constant_values=NEG_PAD).astype(jnp.float32)
    xq = x.astype(mxu_dtype)

    tb = _pick_batch_tile(B) if tb is None else tb
    assert B % tb == 0, (B, tb)
    nb = B // tb
    grid = (2, nb)  # (phase, batch-tile); phase is the reduction/outer axis

    kernel = functools.partial(mlp_bn_kernel, batch_size=B)

    out_padded = pl.pallas_call(
        kernel,
        out_shape=jax.ShapeDtypeStruct((B, dp), jnp.float32),
        grid_spec=pltpu.PrefetchScalarGridSpec(
            num_scalar_prefetch=0,
            grid=grid,
            in_specs=[
                pl.BlockSpec((tb, d_in), lambda p, j: (j, 0)),   # x tile
                pl.BlockSpec((d_in, hp), lambda p, j: (0, 0)),   # w1 (VMEM-resident)
                pl.BlockSpec((1, hp), lambda p, j: (0, 0)),      # gamma
                pl.BlockSpec((1, hp), lambda p, j: (0, 0)),      # beta
                pl.BlockSpec((hp, dp), lambda p, j: (0, 0)),     # w2 (VMEM-resident)
                pl.BlockSpec((1, dp), lambda p, j: (0, 0)),      # b2 (padded w/ NEG)
            ],
            out_specs=pl.BlockSpec((tb, dp), lambda p, j: (j, 0)),
            scratch_shapes=[
                pltpu.VMEM((1, hp), jnp.float32),   # sum over batch
                pltpu.VMEM((1, hp), jnp.float32),   # sum of squares over batch
            ],
        ),
        compiler_params=pltpu.CompilerParams(
            # Phase axis is a reduction and the BN-stat scratch is shared across
            # batch tiles, so both axes must run sequentially on one core.
            dimension_semantics=("arbitrary", "arbitrary"),
            vmem_limit_bytes=32 * 1024 * 1024,
        ),
    )(xq, w1p, gammap, betap, w2p, b2p)

    return out_padded[:, :d_out]


def _reference(x, w1, b1, gamma, beta, w2, b2, mxu_dtype=jnp.bfloat16):
    """Pure-JAX reference with the same bf16 MXU-input rounding as the kernel."""
    f32 = jnp.float32
    xq = x.astype(mxu_dtype).astype(f32)
    w1q = w1.astype(mxu_dtype).astype(f32)
    w2q = w2.astype(mxu_dtype).astype(f32)
    h = jnp.dot(xq, w1q, precision=lax.Precision.HIGHEST) + b1
    mean = h.mean(axis=0, keepdims=True)
    var = ((h - mean) ** 2).mean(axis=0, keepdims=True)
    h = (h - mean) * lax.rsqrt(var + BN_EPS)
    h = h * gamma + beta
    h = jnp.maximum(h, 0.0)
    hq = h.astype(mxu_dtype).astype(f32)
    y = jnp.dot(hq, w2q, precision=lax.Precision.HIGHEST) + b2
    return jax.nn.log_softmax(y, axis=1)


if __name__ == "__main__":
    # Small shapes consistent with the module; batch=64 with tb=32 exercises
    # the cross-tile BN-statistics accumulation path (grid = (2, 2)).
    batch, input_size, hidden_size, output_size = 64, 16, 32, 10

    key = jax.random.PRNGKey(0)
    kx, k1, k2, k3, k4, k5, k6 = jax.random.split(key, 7)

    x = jax.random.normal(kx, (batch, input_size), dtype=jnp.float32)

    bound1 = 1.0 / (input_size ** 0.5)
    w1 = jax.random.uniform(k1, (input_size, hidden_size), jnp.float32,
                            -bound1, bound1)
    b1 = jax.random.uniform(k2, (hidden_size,), jnp.float32, -bound1, bound1)

    # Non-trivial BN affine so the folded scale/shift path is really exercised.
    gamma = 1.0 + 0.1 * jax.random.normal(k5, (hidden_size,), jnp.float32)
    beta = 0.1 * jax.random.normal(k6, (hidden_size,), jnp.float32)

    bound2 = 1.0 / (hidden_size ** 0.5)
    w2 = jax.random.uniform(k3, (hidden_size, output_size), jnp.float32,
                            -bound2, bound2)
    b2 = jax.random.uniform(k4, (output_size,), jnp.float32, -bound2, bound2)

    out = mlp_with_bn(x, w1, b1, gamma, beta, w2, b2, tb=32)
    out = jax.block_until_ready(out)

    ref = _reference(x, w1, b1, gamma, beta, w2, b2)
    assert out.shape == (batch, output_size), out.shape
    assert jnp.allclose(out, ref, atol=1e-3, rtol=1e-3), \
        float(jnp.max(jnp.abs(out - ref)))

    print("KERNEL_OK")
</pallas_src>

<mosaic_0001>
module attributes {stable_mosaic.version = 11 : i64} {
  func.func @mlp_bn_kernel(%arg0: i32, %arg1: i32, %arg2: memref<32x16xbf16, #tpu.memory_space<vmem>>, %arg3: memref<16x128xbf16, #tpu.memory_space<vmem>>, %arg4: memref<1x128xf32, #tpu.memory_space<vmem>>, %arg5: memref<1x128xf32, #tpu.memory_space<vmem>>, %arg6: memref<128x128xbf16, #tpu.memory_space<vmem>>, %arg7: memref<1x128xf32, #tpu.memory_space<vmem>>, %arg8: memref<32x128xf32, #tpu.memory_space<vmem>>, %arg9: memref<1x128xf32, #tpu.memory_space<vmem>>, %arg10: memref<1x128xf32, #tpu.memory_space<vmem>>) attributes {dimension_semantics = [#tpu.dimension_semantics<arbitrary>, #tpu.dimension_semantics<arbitrary>], iteration_bounds = array<i64: 2, 2>, scalar_prefetch = 0 : i64, scratch_operands = 2 : i64, tpu.core_type = #tpu.core_type<tc>, window_params = [{transform_indices = @transform_0, window_bounds = array<i64: 32, 16>}, {pipeline_mode = #tpu.pipeline_mode<synchronous>, transform_indices = @transform_1, window_bounds = array<i64: 16, 128>}, {pipeline_mode = #tpu.pipeline_mode<synchronous>, transform_indices = @transform_2, window_bounds = array<i64: 1, 128>}, {pipeline_mode = #tpu.pipeline_mode<synchronous>, transform_indices = @transform_3, window_bounds = array<i64: 1, 128>}, {pipeline_mode = #tpu.pipeline_mode<synchronous>, transform_indices = @transform_4, window_bounds = array<i64: 128, 128>}, {pipeline_mode = #tpu.pipeline_mode<synchronous>, transform_indices = @transform_5, window_bounds = array<i64: 1, 128>}, {transform_indices = @transform_6, window_bounds = array<i64: 32, 128>}]} {
    %c0 = arith.constant 0 : index
    %c0_0 = arith.constant 0 : index
    %0 = vector.load %arg2[%c0, %c0_0] : memref<32x16xbf16, #tpu.memory_space<vmem>>, vector<32x16xbf16>
    %c0_1 = arith.constant 0 : index
    %c0_2 = arith.constant 0 : index
    %1 = vector.load %arg3[%c0_1, %c0_2] : memref<16x128xbf16, #tpu.memory_space<vmem>>, vector<16x128xbf16>
    %cst = arith.constant dense<0.000000e+00> : vector<32x128xf32>
    %2 = tpu.matmul %0, %1, %cst {dimension_numbers = #tpu.dot_dimension_numbers<[1], [0], [0], [1], [0, 0, 1, 1], [], []>} : vector<32x16xbf16>, vector<16x128xbf16>, vector<32x128xf32> -> vector<32x128xf32>
    %c0_i32 = arith.constant 0 : i32
    %3 = arith.cmpi eq, %arg0, %c0_i32 : i32
    %c0_i32_3 = arith.constant 0 : i32
    %4 = arith.cmpi eq, %arg1, %c0_i32_3 : i32
    %5 = arith.andi %3, %4 : i1
    %6 = arith.extui %5 : i1 to i32
    %c0_i32_4 = arith.constant 0 : i32
    %7 = arith.cmpi ne, %6, %c0_i32_4 : i32
    scf.if %7 {
      %cst_8 = arith.constant 0.000000e+00 : f32
      %14 = vector.broadcast %cst_8 : f32 to vector<1x128xf32>
      %c0_9 = arith.constant 0 : index
      %c0_10 = arith.constant 0 : index
      %15 = vector.load %arg9[%c0_9, %c0_10] : memref<1x128xf32, #tpu.memory_space<vmem>>, vector<1x128xf32>
      tpu.vector_store %arg9[%c0_9, %c0_10], %14 {strides = array<i32>} : memref<1x128xf32, #tpu.memory_space<vmem>>, vector<1x128xf32>,
      %cst_11 = arith.constant 0.000000e+00 : f32
      %16 = vector.broadcast %cst_11 : f32 to vector<1x128xf32>
      %c0_12 = arith.constant 0 : index
      %c0_13 = arith.constant 0 : index
      %17 = vector.load %arg10[%c0_12, %c0_13] : memref<1x128xf32, #tpu.memory_space<vmem>>, vector<1x128xf32>
      tpu.vector_store %arg10[%c0_12, %c0_13], %16 {strides = array<i32>} : memref<1x128xf32, #tpu.memory_space<vmem>>, vector<1x128xf32>,
    } else {
    }
    %c0_i32_5 = arith.constant 0 : i32
    %8 = arith.cmpi eq, %arg0, %c0_i32_5 : i32
    %9 = arith.extui %8 : i1 to i32
    %c0_i32_6 = arith.constant 0 : i32
    %10 = arith.cmpi ne, %9, %c0_i32_6 : i32
    scf.if %10 {
      %c0_8 = arith.constant 0 : index
      %c0_9 = arith.constant 0 : index
      %14 = vector.load %arg9[%c0_8, %c0_9] : memref<1x128xf32, #tpu.memory_space<vmem>>, vector<1x128xf32>
      %cst_10 = arith.constant dense<0.000000e+00> : vector<128xf32>
      %15 = vector.multi_reduction <add>, %2, %cst_10 [0] : vector<32x128xf32> to vector<128xf32>
      %16 = vector.shape_cast %15 : vector<128xf32> to vector<1x128xf32>
      %17 = arith.addf %14, %16 : vector<1x128xf32>
      %c0_11 = arith.constant 0 : index
      %c0_12 = arith.constant 0 : index
      %18 = vector.load %arg9[%c0_11, %c0_12] : memref<1x128xf32, #tpu.memory_space<vmem>>, vector<1x128xf32>
      tpu.vector_store %arg9[%c0_11, %c0_12], %17 {strides = array<i32>} : memref<1x128xf32, #tpu.memory_space<vmem>>, vector<1x128xf32>,
      %c0_13 = arith.constant 0 : index
      %c0_14 = arith.constant 0 : index
      %19 = vector.load %arg10[%c0_13, %c0_14] : memref<1x128xf32, #tpu.memory_space<vmem>>, vector<1x128xf32>
      %20 = arith.mulf %2, %2 : vector<32x128xf32>
      %cst_15 = arith.constant dense<0.000000e+00> : vector<128xf32>
      %21 = vector.multi_reduction <add>, %20, %cst_15 [0] : vector<32x128xf32> to vector<128xf32>
      %22 = vector.shape_cast %21 : vector<128xf32> to vector<1x128xf32>
      %23 = arith.addf %19, %22 : vector<1x128xf32>
      %c0_16 = arith.constant 0 : index
      %c0_17 = arith.constant 0 : index
      %24 = vector.load %arg10[%c0_16, %c0_17] : memref<1x128xf32, #tpu.memory_space<vmem>>, vector<1x128xf32>
      tpu.vector_store %arg10[%c0_16, %c0_17], %23 {strides = array<i32>} : memref<1x128xf32, #tpu.memory_space<vmem>>, vector<1x128xf32>,
    } else {
    }
    %c1_i32 = arith.constant 1 : i32
    %11 = arith.cmpi eq, %arg0, %c1_i32 : i32
    %12 = arith.extui %11 : i1 to i32
    %c0_i32_7 = arith.constant 0 : i32
    %13 = arith.cmpi ne, %12, %c0_i32_7 : i32
    scf.if %13 {
      %c0_8 = arith.constant 0 : index
      %c0_9 = arith.constant 0 : index
      %14 = vector.load %arg9[%c0_8, %c0_9] : memref<1x128xf32, #tpu.memory_space<vmem>>, vector<1x128xf32>
      %cst_10 = arith.constant 1.562500e-02 : f32
      %15 = vector.broadcast %cst_10 : f32 to vector<1x128xf32>
      %16 = arith.mulf %14, %15 : vector<1x128xf32>
      %c0_11 = arith.constant 0 : index
      %c0_12 = arith.constant 0 : index
      %17 = vector.load %arg10[%c0_11, %c0_12] : memref<1x128xf32, #tpu.memory_space<vmem>>, vector<1x128xf32>
      %cst_13 = arith.constant 1.562500e-02 : f32
      %18 = vector.broadcast %cst_13 : f32 to vector<1x128xf32>
      %19 = arith.mulf %17, %18 : vector<1x128xf32>
      %20 = arith.mulf %16, %16 : vector<1x128xf32>
      %21 = arith.subf %19, %20 : vector<1x128xf32>
      %cst_14 = arith.constant 0.000000e+00 : f32
      %22 = vector.broadcast %cst_14 : f32 to vector<1x128xf32>
      %23 = arith.maximumf %21, %22 : vector<1x128xf32>
      %c0_15 = arith.constant 0 : index
      %c0_16 = arith.constant 0 : index
      %24 = vector.load %arg4[%c0_15, %c0_16] : memref<1x128xf32, #tpu.memory_space<vmem>>, vector<1x128xf32>
      %cst_17 = arith.constant 9.99999974E-6 : f32
      %25 = vector.broadcast %cst_17 : f32 to vector<1x128xf32>
      %26 = arith.addf %23, %25 : vector<1x128xf32>
      %27 = math.rsqrt %26 : vector<1x128xf32>
      %28 = arith.mulf %24, %27 : vector<1x128xf32>
      %c0_18 = arith.constant 0 : index
      %c0_19 = arith.constant 0 : index
      %29 = vector.load %arg5[%c0_18, %c0_19] : memref<1x128xf32, #tpu.memory_space<vmem>>, vector<1x128xf32>
      %30 = arith.mulf %16, %28 : vector<1x128xf32>
      %31 = arith.subf %29, %30 : vector<1x128xf32>
      %32 = vector.broadcast %28 : vector<1x128xf32> to vector<32x128xf32>
      %33 = arith.mulf %2, %32 : vector<32x128xf32>
      %34 = vector.broadcast %31 : vector<1x128xf32> to vector<32x128xf32>
      %35 = arith.addf %33, %34 : vector<32x128xf32>
      %cst_20 = arith.constant 0.000000e+00 : f32
      %36 = vector.broadcast %cst_20 : f32 to vector<32x128xf32>
      %37 = arith.maximumf %35, %36 : vector<32x128xf32>
      %38 = arith.truncf %37 : vector<32x128xf32> to vector<32x128xbf16>
      %c0_21 = arith.constant 0 : index
      %c0_22 = arith.constant 0 : index
      %39 = vector.load %arg6[%c0_21, %c0_22] : memref<128x128xbf16, #tpu.memory_space<vmem>>, vector<128x128xbf16>
      %cst_23 = arith.constant dense<0.000000e+00> : vector<32x128xf32>
      %40 = tpu.matmul %38, %39, %cst_23 {dimension_numbers = #tpu.dot_dimension_numbers<[1], [0], [0], [1], [0, 0, 1, 1], [], []>} : vector<32x128xbf16>, vector<128x128xbf16>, vector<32x128xf32> -> vector<32x128xf32>
      %c0_24 = arith.constant 0 : index
      %c0_25 = arith.constant 0 : index
      %41 = vector.load %arg7[%c0_24, %c0_25] : memref<1x128xf32, #tpu.memory_space<vmem>>, vector<1x128xf32>
      %42 = vector.broadcast %41 : vector<1x128xf32> to vector<32x128xf32>
      %43 = arith.addf %40, %42 : vector<32x128xf32>
      %cst_26 = arith.constant dense<0xFF800000> : vector<32xf32>
      %44 = vector.multi_reduction <maximumf>, %43, %cst_26 [1] : vector<32x128xf32> to vector<32xf32>
      %45 = vector.shape_cast %44 : vector<32xf32> to vector<32x1xf32>
      %46 = vector.broadcast %45 : vector<32x1xf32> to vector<32x128xf32>
      %47 = arith.subf %43, %46 : vector<32x128xf32>
      %48 = math.exp %47 : vector<32x128xf32>
      %cst_27 = arith.constant dense<0.000000e+00> : vector<32xf32>
      %49 = vector.multi_reduction <add>, %48, %cst_27 [1] : vector<32x128xf32> to vector<32xf32>
      %50 = vector.shape_cast %49 : vector<32xf32> to vector<32x1xf32>
      %51 = math.log %50 : vector<32x1xf32>
      %52 = vector.broadcast %51 : vector<32x1xf32> to vector<32x128xf32>
      %53 = arith.subf %47, %52 : vector<32x128xf32>
      %c0_28 = arith.constant 0 : index
      %c0_29 = arith.constant 0 : index
      %54 = vector.load %arg8[%c0_28, %c0_29] : memref<32x128xf32, #tpu.memory_space<vmem>>, vector<32x128xf32>
      tpu.vector_store %arg8[%c0_28, %c0_29], %53 {strides = array<i32>} : memref<32x128xf32, #tpu.memory_space<vmem>>, vector<32x128xf32>,
    } else {
    }
    return
  }
  func.func @transform_0(%arg0: i32, %arg1: i32) -> (i32, i32) {
    %c0_i32 = arith.constant 0 : i32
    %c0_i32_0 = arith.constant 0 : i32
    return %arg1, %c0_i32 : i32, i32
  }
  func.func @transform_1(%arg0: i32, %arg1: i32) -> (i32, i32) {
    %c0_i32 = arith.constant 0 : i32
    %c0_i32_0 = arith.constant 0 : i32
    %c0_i32_1 = arith.constant 0 : i32
    return %c0_i32, %c0_i32_0 : i32, i32
  }
  func.func @transform_2(%arg0: i32, %arg1: i32) -> (i32, i32) {
    %c0_i32 = arith.constant 0 : i32
    %c0_i32_0 = arith.constant 0 : i32
    %c0_i32_1 = arith.constant 0 : i32
    return %c0_i32, %c0_i32_0 : i32, i32
  }
  func.func @transform_3(%arg0: i32, %arg1: i32) -> (i32, i32) {
    %c0_i32 = arith.constant 0 : i32
    %c0_i32_0 = arith.constant 0 : i32
    %c0_i32_1 = arith.constant 0 : i32
    return %c0_i32, %c0_i32_0 : i32, i32
  }
  func.func @transform_4(%arg0: i32, %arg1: i32) -> (i32, i32) {
    %c0_i32 = arith.constant 0 : i32
    %c0_i32_0 = arith.constant 0 : i32
    %c0_i32_1 = arith.constant 0 : i32
    return %c0_i32, %c0_i32_0 : i32, i32
  }
  func.func @transform_5(%arg0: i32, %arg1: i32) -> (i32, i32) {
    %c0_i32 = arith.constant 0 : i32
    %c0_i32_0 = arith.constant 0 : i32
    %c0_i32_1 = arith.constant 0 : i32
    return %c0_i32, %c0_i32_0 : i32, i32
  }
  func.func @transform_6(%arg0: i32, %arg1: i32) -> (i32, i32) {
    %c0_i32 = arith.constant 0 : i32
    %c0_i32_0 = arith.constant 0 : i32
    return %arg1, %c0_i32 : i32, i32
  }
}

</mosaic_0001>

<llo_original>
// kernel: tpu_custom_call.1
$region0: #{tpu_custom_call.1}
  #allocation0 [shape = 'u32[]', space=smem, size = 0x4, offset = 0x4, fixed_abs, tag = 'smem constant byte address 0x4 - core index']
  #allocation1 [shape = 'u32[144,128]{1,0:T(1,128)}', space=vmem, size = 0x12000, scoped, tag = 'internal scratch']
  #allocation2 [shape = 'f32[1,128]{1,0:T(1,128)}', space=vmem, size = 0x200, scoped, tag = 'scratch operand']
  #allocation3 [shape = 'f32[1,128]{1,0:T(1,128)}', space=vmem, size = 0x200, scoped, tag = 'scratch operand']
  %s0 = inlined_call_operand.vmem [shape: bf16[64,16], index: 0, kind: input, shape index: {}]
  %s1 = inlined_call_operand.vmem [shape: bf16[16,128], index: 1, kind: input, shape index: {}]
  %s2 = inlined_call_operand.vmem [shape: f32[1,128], index: 2, kind: input, shape index: {}]
  %s3 = inlined_call_operand.vmem [shape: f32[1,128], index: 3, kind: input, shape index: {}]
  %s4 = inlined_call_operand.hbm [shape: bf16[128,128], index: 4, kind: input, shape index: {}]
  %s5 = inlined_call_operand.vmem [shape: f32[1,128], index: 5, kind: input, shape index: {}]
  %s6 = inlined_call_operand.hbm [shape: f32[64,128], index: 6, kind: output, shape index: {}]
  %s7 = sld [smem:[#allocation0]]
  $region73: #{tpu_custom_call.1} parent=0
    _
  %s9 = ssub.s32 1, %s7
  %s10 = scalar_select 0, %s9, %s7
  $region1: #{tpu_custom_call.1} parent=0
    #allocation4 [shape = 'u8[32768]{0}', space=vmem, size = 0x8000, scoped, tag = 'input window, operand 4, single buffered']
    #allocation5 [shape = 's32[2]{0}', space=sflag, size = 0x8, scoped, tag = 'scoped memory for tpu_custom_call.1']
    #allocation6 [shape = 's32[2]{0}', space=sflag, size = 0x8, scoped, tag = 'scoped memory for tpu_custom_call.1']
    #allocation7 [shape = 'u8[32768]{0}', space=vmem, size = 0x8000, scoped, tag = 'output window, operand 0']
    %11 = vsyncpa [#allocation5], 0
    %12 = vsyncpa [#allocation6], 0
    %s13 = scalar_lea.sflag [#allocation6], 1
    %14 = vsyncpa %s13, 0
    loop: start=0, step=1, limit=6
    $region2: #{tpu_custom_call.1} parent=1 // loop_pre_header
      _
    $region3: #{tpu_custom_call.1} parent=1 // loop_header
      %s16 = sphi 0, %s20
      %p17 = scmp.ge.s32.totalorder %s16, 6
      %s23 = sphi 0, %s35
      %s24 = sphi 0, %s31
      %s25 = sphi 0, %s23
      %s26 = sphi 0, %s24
      %s27 = sphi 0, %s25
      %s28 = sphi 0, %s26
      %s38 = sphi 0, %s40
      %s41 = sphi 0, %s38
      %s42 = sphi 0, %s41
      %s58 = sphi 0, %s42
      %s62 = sphi 0, %s62
      %s64 = sphi 0, %s62
      %s65 = sphi 0, %s64
      %s79 = sphi 0, %s65
      %s83 = sphi 0, %s83
      %s85 = sphi 0, %s83
      %s86 = sphi 0, %s85
      %s100 = sphi 0, %s86
      %s104 = sphi 0, %s104
      %s106 = sphi 0, %s104
      %s107 = sphi 0, %s106
      %s121 = sphi 0, %s107
      %s125 = sphi 0, %s125
      %s127 = sphi 0, %s125
      %s128 = sphi 0, %s127
      %s142 = sphi 0, %s128
      %s146 = sphi 0, %s146
      %s148 = sphi 0, %s146
      %s149 = sphi 0, %s148
      %s163 = sphi 0, %s149
      %s169 = sphi 0, %s171
      %s172 = sphi 0, %s169
      %s173 = sphi 0, %s172
      %s189 = sphi 0, %s173
    $region4: #{tpu_custom_call.1} parent=1 // loop_header_branch
      %19 = sbr.rel (%p17) target = $region8
    $region5: #{tpu_custom_call.1} parent=1 // loop_body
      %s21 = ssub.s32 %s16, 1
      %s22 = ssub.s32 %s16, 2
      %s29 = sadd.s32 1, %s24
      %p30 = scmp.ge.s32.totalorder %s29, 2
      %s31 = scalar_select %p30, 0, %s29
      %s32 = sadd.s32 1, %s23
      %s33 = scalar_select %p30, %s32, %s23
      %p34 = scmp.ge.s32.totalorder %s33, 2
      %s35 = scalar_select %p34, 0, %s33
      %s36 = ssub.s32 %s24, %s31
      %p37 = scmp.eq.s32.totalorder %s36, 0
      %s39 = sadd.s32 %s38, 1
      %s40 = scalar_select %p37, %s38, %s39
      %p43 = pneg %p37
      %p44 = scmp.eq.s32.totalorder %s16, 3
      %p45 = por %p43, %p44
      %p46 = scmp.ne.s32.totalorder %s38, %s41
      %p47 = scmp.eq.s32.totalorder %s16, 0
      %p48 = por %p46, %p47
      %p49 = scmp.ne.s32.totalorder %s38, %s41
      %p50 = scmp.eq.s32.totalorder %s21, 3
      %p51 = por %p49, %p50
      %p52 = scmp.ne.s32.totalorder %s41, %s42
      %p53 = scmp.eq.s32.totalorder %s21, 0
      %p54 = por %p52, %p53
      %p55 = scmp.ne.s32.totalorder %s41, %s42
      %p56 = scmp.eq.s32.totalorder %s22, 3
      %p57 = por %p55, %p56
      %p59 = scmp.ne.s32.totalorder %s42, %s58
      %p60 = scmp.eq.s32.totalorder %s22, 0
      %p61 = por %p59, %p60
      %s63 = sadd.s32 %s62, 1
      %p66 = scmp.eq.s32.totalorder %s16, 3
      %p67 = scmp.ne.s32.totalorder %s62, %s64
      %p68 = scmp.eq.s32.totalorder %s16, 0
      %p69 = por %p67, %p68
      %p70 = scmp.ne.s32.totalorder %s62, %s64
      %p71 = scmp.eq.s32.totalorder %s21, 3
      %p72 = por %p70, %p71
      %p73 = scmp.ne.s32.totalorder %s64, %s65
      %p74 = scmp.eq.s32.totalorder %s21, 0
      %p75 = por %p73, %p74
      %p76 = scmp.ne.s32.totalorder %s64, %s65
      %p77 = scmp.eq.s32.totalorder %s22, 3
      %p78 = por %p76, %p77
      %p80 = scmp.ne.s32.totalorder %s65, %s79
      %p81 = scmp.eq.s32.totalorder %s22, 0
      %p82 = por %p80, %p81
      %s84 = sadd.s32 %s83, 1
      %p87 = scmp.eq.s32.totalorder %s16, 3
      %p88 = scmp.ne.s32.totalorder %s83, %s85
      %p89 = scmp.eq.s32.totalorder %s16, 0
      %p90 = por %p88, %p89
      %p91 = scmp.ne.s32.totalorder %s83, %s85
      %p92 = scmp.eq.s32.totalorder %s21, 3
      %p93 = por %p91, %p92
      %p94 = scmp.ne.s32.totalorder %s85, %s86
      %p95 = scmp.eq.s32.totalorder %s21, 0
      %p96 = por %p94, %p95
      %p97 = scmp.ne.s32.totalorder %s85, %s86
      %p98 = scmp.eq.s32.totalorder %s22, 3
      %p99 = por %p97, %p98
      %p101 = scmp.ne.s32.totalorder %s86, %s100
      %p102 = scmp.eq.s32.totalorder %s22, 0
      %p103 = por %p101, %p102
      %s105 = sadd.s32 %s104, 1
      %p108 = scmp.eq.s32.totalorder %s16, 3
      %p109 = scmp.ne.s32.totalorder %s104, %s106
      %p110 = scmp.eq.s32.totalorder %s16, 0
      %p111 = por %p109, %p110
      %p112 = scmp.ne.s32.totalorder %s104, %s106
      %p113 = scmp.eq.s32.totalorder %s21, 3
      %p114 = por %p112, %p113
      %p115 = scmp.ne.s32.totalorder %s106, %s107
      %p116 = scmp.eq.s32.totalorder %s21, 0
      %p117 = por %p115, %p116
      %p118 = scmp.ne.s32.totalorder %s106, %s107
      %p119 = scmp.eq.s32.totalorder %s22, 3
      %p120 = por %p118, %p119
      %p122 = scmp.ne.s32.totalorder %s107, %s121
      %p123 = scmp.eq.s32.totalorder %s22, 0
      %p124 = por %p122, %p123
      %s126 = sadd.s32 %s125, 1
      %p129 = scmp.eq.s32.totalorder %s16, 3
      %p130 = scmp.ne.s32.totalorder %s125, %s127
      %p131 = scmp.eq.s32.totalorder %s16, 0
      %p132 = por %p130, %p131
      %p133 = scmp.ne.s32.totalorder %s125, %s127
      %p134 = scmp.eq.s32.totalorder %s21, 3
      %p135 = por %p133, %p134
      %p136 = scmp.ne.s32.totalorder %s127, %s128
      %p137 = scmp.eq.s32.totalorder %s21, 0
      %p138 = por %p136, %p137
      %p139 = scmp.ne.s32.totalorder %s127, %s128
      %p140 = scmp.eq.s32.totalorder %s22, 3
      %p141 = por %p139, %p140
      %p143 = scmp.ne.s32.totalorder %s128, %s142
      %p144 = scmp.eq.s32.totalorder %s22, 0
      %p145 = por %p143, %p144
      %s147 = sadd.s32 %s146, 1
      %p150 = scmp.eq.s32.totalorder %s16, 3
      %p151 = scmp.ne.s32.totalorder %s146, %s148
      %p152 = scmp.eq.s32.totalorder %s16, 0
      %p153 = por %p151, %p152
      %p154 = scmp.ne.s32.totalorder %s146, %s148
      %p155 = scmp.eq.s32.totalorder %s21, 3
      %p156 = por %p154, %p155
      %p157 = scmp.ne.s32.totalorder %s148, %s149
      %p158 = scmp.eq.s32.totalorder %s21, 0
      %p159 = por %p157, %p158
      %p160 = scmp.ne.s32.totalorder %s148, %s149
      %p161 = scmp.eq.s32.totalorder %s22, 3
      %p162 = por %p160, %p161
      %p164 = scmp.ne.s32.totalorder %s149, %s163
      %p165 = scmp.eq.s32.totalorder %s22, 0
      %p166 = por %p164, %p165
      %s167 = ssub.s32 %s24, %s31
      %p168 = scmp.eq.s32.totalorder %s167, 0
      %s170 = sadd.s32 %s169, 1
      %s171 = scalar_select %p168, %s169, %s170
      %p174 = pneg %p168
      %p175 = scmp.eq.s32.totalorder %s16, 3
      %p176 = por %p174, %p175
      %p177 = scmp.ne.s32.totalorder %s169, %s172
      %p178 = scmp.eq.s32.totalorder %s16, 0
      %p179 = por %p177, %p178
      %p180 = scmp.ne.s32.totalorder %s169, %s172
      %p181 = scmp.eq.s32.totalorder %s21, 3
      %p182 = por %p180, %p181
      %p183 = scmp.ne.s32.totalorder %s172, %s173
      %p184 = scmp.eq.s32.totalorder %s21, 0
      %p185 = por %p183, %p184
      %p186 = scmp.ne.s32.totalorder %s172, %s173
      %p187 = scmp.eq.s32.totalorder %s22, 3
      %p188 = por %p186, %p187
      %p190 = scmp.ne.s32.totalorder %s173, %s189
      %p191 = scmp.eq.s32.totalorder %s22, 0
      %p192 = por %p190, %p191
      %p193 = scmp.le.s32.totalorder 1, %s16
      %p194 = scmp.lt.s32.totalorder %s16, 5
      %p195 = pnand %p193, %p194
      %p196 = pneg %p195
      // Predicated region
      $region9: #{tpu_custom_call.1} parent=5 // pred_check
        _
      $region10: #{tpu_custom_call.1} parent=5 // pred_check_branch
        %198 = sbr.rel (%p195) target = $region12
      $region11: #{tpu_custom_call.1} parent=5 // pred_region
        %s199 = ssub.s32 %s16, 1
        // Predicated region
        $region13: #{tpu_custom_call.1} parent=11 // pred_check
          %p200 = pneg %p75
        $region14: #{tpu_custom_call.1} parent=11 // pred_check_branch
          %202 = sbr.rel (%p200) target = $region16
        $region15: #{tpu_custom_call.1} parent=11 // pred_region
          _
        $region16: #{tpu_custom_call.1} parent=11 // pred_fallthru
          _
        // Predicated region
        $region17: #{tpu_custom_call.1} parent=11 // pred_check
          %p203 = pneg %p96
        $region18: #{tpu_custom_call.1} parent=11 // pred_check_branch
          %205 = sbr.rel (%p203) target = $region20
        $region19: #{tpu_custom_call.1} parent=11 // pred_region
          _
        $region20: #{tpu_custom_call.1} parent=11 // pred_fallthru
          _
        // Predicated region
        $region21: #{tpu_custom_call.1} parent=11 // pred_check
          %p206 = pneg %p117
        $region22: #{tpu_custom_call.1} parent=11 // pred_check_branch
          %208 = sbr.rel (%p206) target = $region24
        $region23: #{tpu_custom_call.1} parent=11 // pred_region
          _
        $region24: #{tpu_custom_call.1} parent=11 // pred_fallthru
          _
        // Predicated region
        $region25: #{tpu_custom_call.1} parent=11 // pred_check
          %p209 = pneg %p138
        $region26: #{tpu_custom_call.1} parent=11 // pred_check_branch
          %211 = sbr.rel (%p209) target = $region28
        $region27: #{tpu_custom_call.1} parent=11 // pred_region
          %s213 = ssub.s32 1024, 1024
          %214 = vsyncadd [#allocation5], %s213
          %s215 = sshll.u32 [#allocation4], 4
          %s216 = int_to_ptr.vmem [resolvable:$true] %s215
          %221 = dma.hbm_to_vmem [thread:$0]  %s4, 1024, %s216, [#allocation5], 64, 64, 4
        $region28: #{tpu_custom_call.1} parent=11 // pred_fallthru
          _
        // Predicated region
        $region29: #{tpu_custom_call.1} parent=11 // pred_check
          %p222 = pneg %p159
        $region30: #{tpu_custom_call.1} parent=11 // pred_check_branch
          %224 = sbr.rel (%p222) target = $region32
        $region31: #{tpu_custom_call.1} parent=11 // pred_region
          _
        $region32: #{tpu_custom_call.1} parent=11 // pred_fallthru
          _
      $region12: #{tpu_custom_call.1} parent=5 // pred_fallthru
        _
      %p225 = scmp.lt.s32.totalorder %s16, 4
      // Predicated region
      $region33: #{tpu_custom_call.1} parent=5 // pred_check
        %p226 = pneg %p225
      $region34: #{tpu_custom_call.1} parent=5 // pred_check_branch
        %228 = sbr.rel (%p226) target = $region36
      $region35: #{tpu_custom_call.1} parent=5 // pred_region
        // Predicated region
        $region37: #{tpu_custom_call.1} parent=35 // pred_check
          %p229 = pneg %p48
        $region38: #{tpu_custom_call.1} parent=35 // pred_check_branch
          %231 = sbr.rel (%p229) target = $region40
        $region39: #{tpu_custom_call.1} parent=35 // pred_region
          %s232 = smul.u32 4, %s24
          %p233 = scmp.lt.s32.totalorder %s232, 7
          %s234 = scalar_select %p233, %s232, 7
          %s235 = smul.addr %s234, 4
          %s236 = scalar_lea.vmem %s0, %s235
          %s237 = smul.u32 4, %s24
        $region40: #{tpu_custom_call.1} parent=35 // pred_fallthru
          _
      $region36: #{tpu_custom_call.1} parent=5 // pred_fallthru
        _
      %p238 = scmp.le.s32.totalorder 1, %s16
      %p239 = scmp.lt.s32.totalorder %s16, 5
      %p240 = pnand %p238, %p239
      %p241 = pneg %p240
      // Predicated region
      $region41: #{tpu_custom_call.1} parent=5 // pred_check
        _
      $region42: #{tpu_custom_call.1} parent=5 // pred_check_branch
        %243 = sbr.rel (%p240) target = $region44
      $region43: #{tpu_custom_call.1} parent=5 // pred_region
        %s244 = ssub.s32 %s16, 1
        // Predicated region
        $region45: #{tpu_custom_call.1} parent=43 // pred_check
          %p245 = pneg %p138
        $region46: #{tpu_custom_call.1} parent=43 // pred_check_branch
          %247 = sbr.rel (%p245) target = $region48
        $region47: #{tpu_custom_call.1} parent=43 // pred_region
          %248 = dma.done [#allocation5], 1024
        $region48: #{tpu_custom_call.1} parent=43 // pred_fallthru
          _
        %s249 = smul.u32 4, %s26
        %p250 = scmp.lt.s32.totalorder %s249, 7
        %s251 = scalar_select %p250, %s249, 7
        %s252 = smul.addr %s251, 4
        %s253 = scalar_lea.vmem %s0, %s252
        %p254 = pneg %p54
        %p255 = pneg %p51
        %p256 = pneg %p75
        %p257 = pneg %p72
        %p258 = pneg %p96
        %p259 = pneg %p93
        %p260 = pneg %p117
        %p261 = pneg %p114
        %p262 = pneg %p138
        %p263 = pneg %p135
        %p264 = pneg %p159
        %p265 = pneg %p156
        %p266 = pneg %p185
        %p267 = pneg %p182
        %s268 = sand.u32 %s172, 1
        %s269 = scalar_lea.sflag [#allocation6], %s268
        %s270 = sand.u32 %s172, 1
        %s271 = smul.addr %s270, 32
        %s272 = scalar_lea.vmem [#allocation7], %s271
        %s273 = smul.u32 4, %s26
        %p274 = scmp.lt.s32.totalorder %s273, 7
        %s275 = scalar_select %p274, %s273, 7
        %s276 = smul.addr %s275, 4
        %s277 = scalar_lea.vmem %s0, %s276
        %s278 = smul.u32 4, %s26
        %s279 = smul.u32 4, %s26
        %v281 = vld [vmem:[%s277] sm:$0xf]
        %v282 = vld [vmem:[%s277 + $0x4] sm:$0xf]
        %v283 = vld [vmem:[%s277 + $0x8] sm:$0xf]
        %v284 = vld [vmem:[%s277 + $0xc] sm:$0xf]
        %v285 = vld [vmem:[%s1] sm:$0xf]
        %v286 = vld [vmem:[%s1 + $0x4] sm:$0xf]
        %v291 = vunpack.c.l.b16 %v281
        %v292 = vunpack.c.l.b16 %v282
        %v293 = vunpack.c.l.b16 %v283
        %v294 = vunpack.c.l.b16 %v284
        %v295 = vpack.c.b16 %v292, %v291
        %v296 = vpack.c.b16 %v294, %v293
        %v299 = vunpack.c.l.b16 %v285
        %v300 = vunpack.c.l.b16 %v286
        %v301 = vpack.c.b16 %v300, %v299
        %vm303 = vcmask 130048
        %v305 = vsel %vm303, %v295, 0
        %v308 = vsel %vm303, %v296, 0
        %310 = vmatprep.subr.bf16.mxu0 0
        %311 = vmatpush1.bf16.msra.mxu0 0
        %312 = vmatprep.subr.bf16.mxu0 0
        %313 = vmatpush1.bf16.msra.mxu0 0
        %314 = vmatprep.subr.bf16.mxu0 0
        %315 = vmatpush1.bf16.msra.mxu0 0
        %316 = vmatprep.subr.bf16.mxu0 0
        %317 = vmatpush1.bf16.msra.mxu0 0
        %318 = vmatprep.subr.bf16.mxu0 0
        %319 = vmatpush1.bf16.msra.mxu0 0
        %320 = vmatprep.subr.bf16.mxu0 0
        %321 = vmatpush1.bf16.msra.mxu0 0
        %322 = vmatprep.subr.bf16.mxu0 0
        %323 = vmatpush1.bf16.msra.mxu0 0
        %324 = vmatprep.subr.bf16.mxu0 0
        %325 = vmatpush1.bf16.msra.mxu0 %v301
        %326 = vmatprep.subr.bf16.mxu0 0
        %327 = vmatpush2.bf16.msra.mxu0 0
        %328 = vmatprep.subr.bf16.mxu0 0
        %329 = vmatpush2.bf16.msra.mxu0 0
        %330 = vmatprep.subr.bf16.mxu0 0
        %331 = vmatpush2.bf16.msra.mxu0 0
        %332 = vmatprep.subr.bf16.mxu0 0
        %333 = vmatpush2.bf16.msra.mxu0 0
        %334 = vmatprep.subr.bf16.mxu0 0
        %335 = vmatpush2.bf16.msra.mxu0 0
        %336 = vmatprep.subr.bf16.mxu0 0
        %337 = vmatpush2.bf16.msra.mxu0 0
        %338 = vmatprep.subr.bf16.mxu0 0
        %339 = vmatpush2.bf16.msra.mxu0 0
        %340 = vmatprep.subr.bf16.mxu0 0
        %341 = vmatpush2.bf16.msra.mxu0 0
        %342 = vmatprep.mubr.bf16.mxu0 0
        %343 = vmatmul.mubr.bf16.gmra.mxu0 %v305
        %v344 = vpop.f32.mrf.mxu0
        %v345 = vadd.f32 0.0, %v344
        %v346 = vpop.f32.mrf.mxu0
        %v347 = vpop.f32.mrf.mxu0
        %v348 = vadd.f32 0.0, %v347
        %v349 = vpop.f32.mrf.mxu0
        %350 = vmatprep.mubr.bf16.mxu0 0
        %351 = vmatmul.mubr.bf16.gmra.mxu0 %v308
        %v352 = vpop.f32.mrf.mxu0
        %v353 = vadd.f32 0.0, %v352
        %v354 = vpop.f32.mrf.mxu0
        %v355 = vpop.f32.mrf.mxu0
        %v356 = vadd.f32 0.0, %v355
        %v357 = vpop.f32.mrf.mxu0
        %358 = vdwg.mxu0
        %p359 = scmp.eq.s32.totalorder %s25, 0
        %p360 = scmp.eq.s32.totalorder %s26, 0
        %p361 = pnand %p359, %p360
        %p362 = pneg %p361
        // Predicated region
        $region49: #{tpu_custom_call.1} parent=43 // pred_check
          _
        $region50: #{tpu_custom_call.1} parent=43 // pred_check_branch
          %364 = sbr.rel (%p361) target = $region52
        $region51: #{tpu_custom_call.1} parent=43 // pred_region
          %365 = vst [vmem:[#allocation2] sm:$0x1] 0.0
          %366 = vst [vmem:[#allocation3] sm:$0x1] 0.0
        $region52: #{tpu_custom_call.1} parent=43 // pred_fallthru
          _
        // Predicated region
        $region53: #{tpu_custom_call.1} parent=43 // pred_check
          %p367 = pneg %p359
        $region54: #{tpu_custom_call.1} parent=43 // pred_check_branch
          %369 = sbr.rel (%p367) target = $region56
        $region55: #{tpu_custom_call.1} parent=43 // pred_region
          %v370 = vld [vmem:[#allocation2] sm:$0x1]
          %v371 = vadd.f32 %v345, %v348
          %v372 = vadd.f32 %v371, %v353
          %v373 = vadd.f32 %v372, %v356
          %v374 = vrot.slane %v373, 4
          %v375 = vadd.f32 %v373, %v374
          %v376 = vrot.slane %v375, 2
          %v377 = vadd.f32 %v375, %v376
          %v378 = vrot.slane %v377, 1
          %v379 = vadd.f32 %v377, %v378
          %v380 = vadd.f32 %v370, %v379
          %381 = vst [vmem:[#allocation2] sm:$0x1] %v380
          %v382 = vld [vmem:[#allocation3] sm:$0x1]
          %v383 = vmul.f32 %v345, %v345
          %v384 = vmul.f32 %v348, %v348
          %v385 = vmul.f32 %v353, %v353
          %v386 = vmul.f32 %v356, %v356
          %v387 = vadd.f32 %v383, %v384
          %v388 = vadd.f32 %v387, %v385
          %v389 = vadd.f32 %v388, %v386
          %v390 = vrot.slane %v389, 4
          %v391 = vadd.f32 %v389, %v390
          %v392 = vrot.slane %v391, 2
          %v393 = vadd.f32 %v391, %v392
          %v394 = vrot.slane %v393, 1
          %v395 = vadd.f32 %v393, %v394
          %v396 = vadd.f32 %v382, %v395
          %397 = vst [vmem:[#allocation3] sm:$0x1] %v396
        $region56: #{tpu_custom_call.1} parent=43 // pred_fallthru
          _
        %p398 = scmp.eq.s32.totalorder %s25, 1
        // Predicated region
        $region57: #{tpu_custom_call.1} parent=43 // pred_check
          %p399 = pneg %p398
        $region58: #{tpu_custom_call.1} parent=43 // pred_check_branch
          %401 = sbr.rel (%p399) target = $region60
        $region59: #{tpu_custom_call.1} parent=43 // pred_region
          %v402 = vld [vmem:[#allocation2] sm:$0x1]
          %v403 = vmul.f32 %v402, 0.015625
          %v404 = vld [vmem:[#allocation3] sm:$0x1]
          %v405 = vmul.f32 %v404, 0.015625
          %v406 = vmul.f32 %v403, %v403
          %v407 = vsub.f32 %v405, %v406
          %v408 = vmax.f32 %v407, 0.0
          %v409 = vld [vmem:[%s2] sm:$0x1]
          %v410 = vadd.f32 %v408, 1e-05
          %v411 = vrsqrt.pop %v410
          %v412 = vmul.f32 %v409, %v411
          %v413 = vld [vmem:[%s3] sm:$0x1]
          %v414 = vmul.f32 %v403, %v412
          %v415 = vsub.f32 %v413, %v414
          %v417 = vlaneseq
          %v418 = vshrl.u32 %v417, 7
          %v419 = vsub.s32 0, %v418
          %v420 = vrot.slane %v412, %v419
          %v422 = vmul.f32 %v345, %v420
          %v423 = vmul.f32 %v348, %v420
          %v424 = vmul.f32 %v353, %v420
          %v425 = vmul.f32 %v356, %v420
          %v427 = vlaneseq
          %v428 = vshrl.u32 %v427, 7
          %v429 = vsub.s32 0, %v428
          %v430 = vrot.slane %v415, %v429
          %v432 = vadd.f32 %v422, %v430
          %v433 = vadd.f32 %v423, %v430
          %v434 = vadd.f32 %v424, %v430
          %v435 = vadd.f32 %v425, %v430
          %v436 = vmax.f32 %v432, 0.0
          %v437 = vmax.f32 %v433, 0.0
          %v438 = vmax.f32 %v434, 0.0
          %v439 = vmax.f32 %v435, 0.0
          %v440 = vpack.c.bf16 %v437, %v436
          %v441 = vpack.c.bf16 %v439, %v438
          %v442 = vld [vmem:[#allocation4] sm:$0xf]
          %v443 = vld [vmem:[#allocation4 + $0x4] sm:$0xf]
          %v444 = vld [vmem:[#allocation4 + $0x8] sm:$0xf]
          %v445 = vld [vmem:[#allocation4 + $0xc] sm:$0xf]
          %v446 = vld [vmem:[#allocation4 + $0x10] sm:$0xf]
          %v447 = vld [vmem:[#allocation4 + $0x14] sm:$0xf]
          %v448 = vld [vmem:[#allocation4 + $0x18] sm:$0xf]
          %v449 = vld [vmem:[#allocation4 + $0x1c] sm:$0xf]
          %v450 = vld [vmem:[#allocation4 + $0x20] sm:$0xf]
          %v451 = vld [vmem:[#allocation4 + $0x24] sm:$0xf]
          %v452 = vld [vmem:[#allocation4 + $0x28] sm:$0xf]
          %v453 = vld [vmem:[#allocation4 + $0x2c] sm:$0xf]
          %v454 = vld [vmem:[#allocation4 + $0x30] sm:$0xf]
          %v455 = vld [vmem:[#allocation4 + $0x34] sm:$0xf]
          %v456 = vld [vmem:[#allocation4 + $0x38] sm:$0xf]
          %v457 = vld [vmem:[#allocation4 + $0x3c] sm:$0xf]
          %v458 = vld [vmem:[%s5] sm:$0x1]
          %v460 = vlaneseq
          %v461 = vshrl.u32 %v460, 7
          %v462 = vsub.s32 0, %v461
          %v463 = vrot.slane %v458, %v462
          %v481 = vunpack.c.l.b16 %v442
          %v482 = vunpack.c.l.b16 %v443
          %v483 = vunpack.c.l.b16 %v444
          %v484 = vunpack.c.l.b16 %v445
          %v485 = vunpack.c.l.b16 %v446
          %v486 = vunpack.c.l.b16 %v447
          %v487 = vunpack.c.l.b16 %v448
          %v488 = vunpack.c.l.b16 %v449
          %v489 = vunpack.c.l.b16 %v450
          %v490 = vunpack.c.l.b16 %v451
          %v491 = vunpack.c.l.b16 %v452
          %v492 = vunpack.c.l.b16 %v453
          %v493 = vunpack.c.l.b16 %v454
          %v494 = vunpack.c.l.b16 %v455
          %v495 = vunpack.c.l.b16 %v456
          %v496 = vunpack.c.l.b16 %v457
          %v497 = vpack.c.b16 %v482, %v481
          %v498 = vpack.c.b16 %v484, %v483
          %v499 = vpack.c.b16 %v486, %v485
          %v500 = vpack.c.b16 %v488, %v487
          %v501 = vpack.c.b16 %v490, %v489
          %v502 = vpack.c.b16 %v492, %v491
          %v503 = vpack.c.b16 %v494, %v493
          %v504 = vpack.c.b16 %v496, %v495
          %513 = vmatprep.subr.bf16.mxu0 0
          %514 = vmatpush1.bf16.msra.mxu0 %v504
          %515 = vmatprep.subr.bf16.mxu0 0
          %516 = vmatpush1.bf16.msra.mxu0 %v503
          %517 = vmatprep.subr.bf16.mxu0 0
          %518 = vmatpush1.bf16.msra.mxu0 %v502
          %519 = vmatprep.subr.bf16.mxu0 0
          %520 = vmatpush1.bf16.msra.mxu0 %v501
          %521 = vmatprep.subr.bf16.mxu0 0
          %522 = vmatpush1.bf16.msra.mxu0 %v500
          %523 = vmatprep.subr.bf16.mxu0 0
          %524 = vmatpush1.bf16.msra.mxu0 %v499
          %525 = vmatprep.subr.bf16.mxu0 0
          %526 = vmatpush1.bf16.msra.mxu0 %v498
          %527 = vmatprep.subr.bf16.mxu0 0
          %528 = vmatpush1.bf16.msra.mxu0 %v497
          %529 = vmatprep.subr.bf16.mxu0 0
          %530 = vmatpush2.bf16.msra.mxu0 0
          %531 = vmatprep.subr.bf16.mxu0 0
          %532 = vmatpush2.bf16.msra.mxu0 0
          %533 = vmatprep.subr.bf16.mxu0 0
          %534 = vmatpush2.bf16.msra.mxu0 0
          %535 = vmatprep.subr.bf16.mxu0 0
          %536 = vmatpush2.bf16.msra.mxu0 0
          %537 = vmatprep.subr.bf16.mxu0 0
          %538 = vmatpush2.bf16.msra.mxu0 0
          %539 = vmatprep.subr.bf16.mxu0 0
          %540 = vmatpush2.bf16.msra.mxu0 0
          %541 = vmatprep.subr.bf16.mxu0 0
          %542 = vmatpush2.bf16.msra.mxu0 0
          %543 = vmatprep.subr.bf16.mxu0 0
          %544 = vmatpush2.bf16.msra.mxu0 0
          %545 = vmatprep.mubr.bf16.mxu0 0
          %546 = vmatmul.mubr.bf16.gmra.mxu0 %v440
          %v547 = vpop.f32.mrf.mxu0
          %v548 = vadd.f32 %v463, %v547
          %v549 = vpop.f32.mrf.mxu0
          %v550 = vpop.f32.mrf.mxu0
          %v551 = vadd.f32 %v463, %v550
          %v552 = vpop.f32.mrf.mxu0
          %553 = vmatprep.mubr.bf16.mxu0 0
          %554 = vmatmul.mubr.bf16.gmra.mxu0 %v441
          %v555 = vpop.f32.mrf.mxu0
          %v556 = vadd.f32 %v463, %v555
          %v557 = vpop.f32.mrf.mxu0
          %v558 = vpop.f32.mrf.mxu0
          %v559 = vadd.f32 %v463, %v558
          %v560 = vpop.f32.mrf.mxu0
          %561 = vdwg.mxu0
          %562 = vmax.xlane.f32.xlu0 %v548
          %v563 = vpop.xlane.xlu0 %562
          %564 = vmax.xlane.f32.xlu0 %v551
          %v565 = vpop.xlane.xlu0 %564
          %566 = vmax.xlane.f32.xlu0 %v556
          %v567 = vpop.xlane.xlu0 %566
          %568 = vmax.xlane.f32.xlu0 %v559
          %v569 = vpop.xlane.xlu0 %568
          %v570 = vsub.f32 %v548, %v563
          %v571 = vsub.f32 %v551, %v565
          %v572 = vsub.f32 %v556, %v567
          %v573 = vsub.f32 %v559, %v569
          %v574 = vmul.f32 %v570, 1.442695
          %v575 = vpow.pop %v574
          %v576 = vmul.f32 %v571, 1.442695
          %v577 = vpow.pop %v576
          %v578 = vmul.f32 %v572, 1.442695
          %v579 = vpow.pop %v578
          %v580 = vmul.f32 %v573, 1.442695
          %v581 = vpow.pop %v580
          %582 = vadd.xlane.f32.xlu0 %v575
          %v583 = vpop.xlane.xlu0 %582
          %584 = vadd.xlane.f32.xlu0 %v577
          %v585 = vpop.xlane.xlu0 %584
          %586 = vadd.xlane.f32.xlu0 %v579
          %v587 = vpop.xlane.xlu0 %586
          %588 = vadd.xlane.f32.xlu0 %v581
          %v589 = vpop.xlane.xlu0 %588
          %v590 = vlog2.pop %v583
          %v591 = vmul.f32 %v590, 0.6931472
          %v592 = vlog2.pop %v585
          %v593 = vmul.f32 %v592, 0.6931472
          %v594 = vlog2.pop %v587
          %v595 = vmul.f32 %v594, 0.6931472
          %v596 = vlog2.pop %v589
          %v597 = vmul.f32 %v596, 0.6931472
          %v598 = vsub.f32 %v570, %v591
          %v599 = vsub.f32 %v571, %v593
          %v600 = vsub.f32 %v572, %v595
          %v601 = vsub.f32 %v573, %v597
          %602 = vst [vmem:[%s272] sm:$0xff] %v598
          %603 = vst [vmem:[%s272 + $0x8] sm:$0xff] %v599
          %604 = vst [vmem:[%s272 + $0x10] sm:$0xff] %v600
          %605 = vst [vmem:[%s272 + $0x18] sm:$0xff] %v601
        $region60: #{tpu_custom_call.1} parent=43 // pred_fallthru
          _
        %s606 = sand.u32 %s172, 1
        %s607 = scalar_lea.sflag [#allocation6], %s606
        %s608 = sand.u32 %s172, 1
        %s609 = smul.addr %s608, 32
        %s610 = scalar_lea.vmem [#allocation7], %s609
        // Predicated region
        $region61: #{tpu_custom_call.1} parent=43 // pred_check
          %p611 = pneg %p182
        $region62: #{tpu_custom_call.1} parent=43 // pred_check_branch
          %613 = sbr.rel (%p611) target = $region64
        $region63: #{tpu_custom_call.1} parent=43 // pred_region
          %s614 = smul.u32 4, %s26
          %s616 = ssub.s32 512, 512
          %617 = vsyncadd %s607, %s616
          %s618 = smul.addr %s614, 128
          %s619 = scalar_lea.hbm %s6, %s618
          %s620 = sshll.u32 %s610, 4
          %s621 = int_to_ptr.vmem [resolvable:$true] %s620
          %626 = dma.vmem_to_hbm [thread:$0]  %s621, 512, %s619, %s607, 128, 128, 8
        $region64: #{tpu_custom_call.1} parent=43 // pred_fallthru
          _
      $region44: #{tpu_custom_call.1} parent=5 // pred_fallthru
        _
      %p627 = scmp.le.s32.totalorder 2, %s16
      // Predicated region
      $region65: #{tpu_custom_call.1} parent=5 // pred_check
        %p628 = pneg %p627
      $region66: #{tpu_custom_call.1} parent=5 // pred_check_branch
        %630 = sbr.rel (%p628) target = $region68
      $region67: #{tpu_custom_call.1} parent=5 // pred_region
        %s631 = ssub.s32 %s16, 2
        // Predicated region
        $region69: #{tpu_custom_call.1} parent=67 // pred_check
          %p632 = pneg %p188
        $region70: #{tpu_custom_call.1} parent=67 // pred_check_branch
          %634 = sbr.rel (%p632) target = $region72
        $region71: #{tpu_custom_call.1} parent=67 // pred_region
          %s635 = sand.u32 %s173, 1
          %s636 = scalar_lea.sflag [#allocation6], %s635
          %s637 = sand.u32 %s173, 1
          %s638 = smul.addr %s637, 32
          %s639 = scalar_lea.vmem [#allocation7], %s638
          %640 = dma.done %s636, 512
        $region72: #{tpu_custom_call.1} parent=67 // pred_fallthru
          _
      $region68: #{tpu_custom_call.1} parent=5 // pred_fallthru
        _
    $region6: #{tpu_custom_call.1} parent=1 // loop_footer
      %s20 = sadd.s32 1, %s16
    $region7: #{tpu_custom_call.1} parent=1 // loop_footer_branch
      %15 = sbr.rel target = $region3
    $region8: #{tpu_custom_call.1} parent=1 // loop_exit
      _
    %641 = vsyncpa [#allocation5], 1
    %s642 = scalar_lea.sflag [#allocation5], 1
    %643 = vsyncpa %s642, 1
    %644 = vsyncpa [#allocation6], 1
    %s645 = scalar_lea.sflag [#allocation6], 1
    %646 = vsyncpa %s645, 1

</llo_original>
